<compile_context>
chip_gen: v5e
topology: v5e:2x2
jax: 0.10.0
libtpu: 0.0.40
codegen_flags: <defaults>
</compile_context>

<pallas_src>
import jax
import jax.numpy as jnp
from jax.experimental import pallas as pl
from jax.experimental.pallas import tpu as pltpu


def _round_up(a: int, b: int) -> int:
    return (a + b - 1) // b * b


def _make_embed_kernel(tq, vocab_p, emb_dim_p, v_tile, precision):
    """Build the gather kernel for one geometry (all sizes static)."""
    num_vtiles = vocab_p // v_tile

    def kernel(idx_ref, emb_ref, out_ref, acc_ref):
        # idx_ref: (TQ, 1) int32            -- token ids for this chunk
        # emb_ref: (vocab_p, emb_dim_p)     -- full table, VMEM-resident (Buffered(1))
        # out_ref: (TQ, emb_dim_p)          -- lane-dense output tile
        # acc_ref: (TQ, emb_dim_p) f32      -- scratch (used only on the tiled path)
        idx = idx_ref[...]                                     # (TQ, 1)

        if num_vtiles == 1:
            # Small/medium vocab: single one-hot matmul on the MXU.
            col = jax.lax.broadcasted_iota(jnp.int32, (tq, vocab_p), 1)
            one_hot = (col == idx).astype(emb_ref.dtype)       # (TQ, vocab_p)
            out_ref[...] = jnp.dot(
                one_hot, emb_ref[...],
                preferred_element_type=jnp.float32,
                precision=precision,
            ).astype(out_ref.dtype)
        else:
            # Larger vocab: tile the vocab axis so the one-hot intermediate
            # stays small; accumulate exact row copies into f32 scratch.
            acc_ref[...] = jnp.zeros_like(acc_ref)
            rel = jax.lax.broadcasted_iota(jnp.int32, (tq, v_tile), 1)  # hoisted

            def body(t, carry):
                v0 = pl.multiple_of(t * v_tile, v_tile)
                one_hot = ((rel + v0) == idx).astype(emb_ref.dtype)
                acc_ref[...] += jnp.dot(
                    one_hot, emb_ref[pl.ds(v0, v_tile), :],
                    preferred_element_type=jnp.float32,
                    precision=precision,
                )
                return carry

            jax.lax.fori_loop(0, num_vtiles, body, 0)
            out_ref[...] = acc_ref[...].astype(out_ref.dtype)

    return kernel


def embedding_forward(emb_mat, x):
    """Pallas equivalent of Embedding.forward.

    emb_mat: (vocab, emb_dim) float array (f32 or bf16)
    x:       (batch, seq_len) integer indices (only row 0 is used, as in torch)
    returns: (1, seq_len, emb_dim), dtype of emb_mat
    """
    emb_mat = jnp.asarray(emb_mat)
    x = jnp.asarray(x)
    vocab, emb_dim = emb_mat.shape
    seq_len = x.shape[1]

    # ---- tile geometry ------------------------------------------------------
    if seq_len >= 512:
        tq = 512
    elif seq_len >= 256:
        tq = 256
    elif seq_len >= 128:
        tq = 128
    else:
        tq = _round_up(seq_len, 8)
    seq_pad = _round_up(seq_len, tq)
    num_chunks = seq_pad // tq

    # Lane-dense output: pad emb_dim to a multiple of 128 (unmasked vst).
    emb_dim_p = _round_up(emb_dim, 128)

    # Vocab tiling: bound the (TQ, v_tile) one-hot intermediate.
    v_tile_max = 2048
    if vocab <= 2 * v_tile_max:
        vocab_p = _round_up(vocab, 8)
        v_tile = vocab_p
    else:
        v_tile = v_tile_max
        vocab_p = _round_up(vocab, v_tile)

    table = emb_mat
    if (vocab_p, emb_dim_p) != (vocab, emb_dim):
        table = jnp.pad(emb_mat, ((0, vocab_p - vocab), (0, emb_dim_p - emb_dim)))

    # ---- indices ------------------------------------------------------------
    # NOTE: torch-style embedding raises on out-of-range ids; here we clamp.
    idx = jnp.clip(x[0].astype(jnp.int32), 0, vocab - 1)       # (seq_len,)
    idx = jnp.pad(idx, (0, seq_pad - seq_len))                 # pad -> row 0
    idx2d = idx.reshape(seq_pad, 1)

    # ---- VMEM budget (per TensorCore) ---------------------------------------
    itemsize = table.dtype.itemsize
    table_bytes = vocab_p * emb_dim_p * itemsize               # Buffered(1) -> x1
    idx_bytes = 2 * tq * 4                                     # double-buffered
    out_bytes = 2 * tq * emb_dim_p * itemsize                  # double-buffered
    onehot_bytes = tq * v_tile * 4                             # intermediate
    acc_bytes = tq * emb_dim_p * 4                             # f32 scratch
    slack = 2 << 20
    vmem_needed = (table_bytes + idx_bytes + out_bytes
                   + onehot_bytes + acc_bytes + slack)

    try:
        vmem_cap = int(pltpu.get_tpu_info().vmem_capacity_bytes)
    except Exception:
        vmem_cap = 64 << 20   # conservative: v7x per-TC capacity

    if vmem_needed > int(0.9 * vmem_cap):
        # TODO(synk): switch to a manually double-buffered row-DMA gather
        # (memory_space=pl.ANY + pltpu.make_async_copy) when the table cannot
        # be VMEM-resident on this generation.
        raise NotImplementedError(
            f"embedding table needs ~{vmem_needed >> 20} MiB VMEM but only "
            f"~{vmem_cap >> 20} MiB is available per TensorCore")

    vmem_limit = int(min(max(vmem_needed, 32 << 20), vmem_cap))

    # Exact row copies: f32 tables use HIGHEST (multi-pass) MXU precision so the
    # one-hot matmul does not truncate mantissas; bf16 runs at native rate.
    precision = (jax.lax.Precision.HIGHEST
                 if table.dtype == jnp.float32 else jax.lax.Precision.DEFAULT)

    kernel = _make_embed_kernel(tq, vocab_p, emb_dim_p, v_tile, precision)

    out = pl.pallas_call(
        kernel,
        out_shape=jax.ShapeDtypeStruct((seq_pad, emb_dim_p), table.dtype),
        grid_spec=pltpu.PrefetchScalarGridSpec(
            num_scalar_prefetch=0,
            grid=(num_chunks,),
            in_specs=[
                # Per-chunk token ids.
                pl.BlockSpec((tq, 1), lambda i: (i, 0)),
                # Full table, constant block index -> DMA'd once, kept resident,
                # single-buffered (double-buffering a constant block is waste).
                pl.BlockSpec((vocab_p, emb_dim_p), lambda i: (0, 0),
                             pipeline_mode=pl.Buffered(1)),
            ],
            out_specs=pl.BlockSpec((tq, emb_dim_p), lambda i: (i, 0)),
            scratch_shapes=[pltpu.VMEM((tq, emb_dim_p), jnp.float32)],
        ),
        compiler_params=pltpu.CompilerParams(
            dimension_semantics=("parallel",),
            vmem_limit_bytes=vmem_limit,
        ),
    )(idx2d, table)

    # Drop padding; match torch: v.view(1, seq_len, -1)
    return out[:seq_len, :emb_dim].reshape(1, seq_len, emb_dim)


if __name__ == "__main__":
    key = jax.random.PRNGKey(0)
    k_emb, k_idx, k_emb2, k_idx2 = jax.random.split(key, 4)

    # Case 1: small vocab, lane-aligned emb_dim, short sequence.
    vocab, emb_dim = 64, 128
    batch, seq_len = 2, 8
    emb_mat = jax.random.normal(k_emb, (vocab, emb_dim), dtype=jnp.float32)
    x = jax.random.randint(k_idx, (batch, seq_len), 0, vocab, dtype=jnp.int32)

    out = jax.block_until_ready(embedding_forward(emb_mat, x))
    ref = emb_mat[x[0]].reshape(1, seq_len, emb_dim)
    assert out.shape == (1, seq_len, emb_dim), out.shape
    assert jnp.allclose(out, ref), "case 1: mismatch vs reference gather"

    # Case 2: un-aligned emb_dim + multi-chunk sequence (exercises padding path).
    vocab2, emb_dim2 = 200, 96
    batch2, seq_len2 = 2, 300
    emb_mat2 = jax.random.normal(k_emb2, (vocab2, emb_dim2), dtype=jnp.float32)
    x2 = jax.random.randint(k_idx2, (batch2, seq_len2), 0, vocab2, dtype=jnp.int32)

    out2 = jax.block_until_ready(embedding_forward(emb_mat2, x2))
    ref2 = emb_mat2[x2[0]].reshape(1, seq_len2, emb_dim2)
    assert out2.shape == (1, seq_len2, emb_dim2), out2.shape
    assert jnp.allclose(out2, ref2), "case 2: mismatch vs reference gather"

    print("KERNEL_OK")
</pallas_src>

<mosaic_0001>
module attributes {stable_mosaic.version = 11 : i64} {
  func.func @kernel(%arg0: i32, %arg1: memref<8x1xi32, #tpu.memory_space<vmem>>, %arg2: memref<64x128xf32, #tpu.memory_space<vmem>>, %arg3: memref<8x128xf32, #tpu.memory_space<vmem>>, %arg4: memref<8x128xf32, #tpu.memory_space<vmem>>) attributes {dimension_semantics = [#tpu.dimension_semantics<parallel>], iteration_bounds = array<i64: 1>, scalar_prefetch = 0 : i64, scratch_operands = 1 : i64, tpu.core_type = #tpu.core_type<tc>, window_params = [{transform_indices = @transform_0, window_bounds = array<i64: 8, 1>}, {pipeline_mode = #tpu.pipeline_mode<synchronous>, transform_indices = @transform_1, window_bounds = array<i64: 64, 128>}, {transform_indices = @transform_2, window_bounds = array<i64: 8, 128>}]} {
    %c0 = arith.constant 0 : index
    %c0_0 = arith.constant 0 : index
    %0 = vector.load %arg1[%c0, %c0_0] : memref<8x1xi32, #tpu.memory_space<vmem>>, vector<8x1xi32>
    %1 = tpu.iota {dimensions = array<i32: 1>} : vector<8x64xi32>
    %2 = vector.broadcast %0 : vector<8x1xi32> to vector<8x64xi32>
    %3 = arith.cmpi eq, %1, %2 : vector<8x64xi32>
    %4 = arith.extui %3 : vector<8x64xi1> to vector<8x64xi32>
    %5 = arith.sitofp %4 : vector<8x64xi32> to vector<8x64xf32>
    %c0_1 = arith.constant 0 : index
    %c0_2 = arith.constant 0 : index
    %6 = vector.load %arg2[%c0_1, %c0_2] : memref<64x128xf32, #tpu.memory_space<vmem>>, vector<64x128xf32>
    %cst = arith.constant dense<0.000000e+00> : vector<8x128xf32>
    %7 = tpu.matmul %5, %6, %cst {dimension_numbers = #tpu.dot_dimension_numbers<[1], [0], [0], [1], [0, 0, 1, 1], [], []>, precision = #tpu.contract_precision<fp32>} : vector<8x64xf32>, vector<64x128xf32>, vector<8x128xf32> -> vector<8x128xf32>
    %c0_3 = arith.constant 0 : index
    %c0_4 = arith.constant 0 : index
    %8 = vector.load %arg3[%c0_3, %c0_4] : memref<8x128xf32, #tpu.memory_space<vmem>>, vector<8x128xf32>
    tpu.vector_store %arg3[%c0_3, %c0_4], %7 {strides = array<i32>} : memref<8x128xf32, #tpu.memory_space<vmem>>, vector<8x128xf32>,
    return
  }
  func.func @transform_0(%arg0: i32) -> (i32, i32) {
    %c0_i32 = arith.constant 0 : i32
    %c0_i32_0 = arith.constant 0 : i32
    return %arg0, %c0_i32 : i32, i32
  }
  func.func @transform_1(%arg0: i32) -> (i32, i32) {
    %c0_i32 = arith.constant 0 : i32
    %c0_i32_0 = arith.constant 0 : i32
    %c0_i32_1 = arith.constant 0 : i32
    return %c0_i32, %c0_i32_0 : i32, i32
  }
  func.func @transform_2(%arg0: i32) -> (i32, i32) {
    %c0_i32 = arith.constant 0 : i32
    %c0_i32_0 = arith.constant 0 : i32
    return %arg0, %c0_i32 : i32, i32
  }
}

</mosaic_0001>

<llo_original>
// kernel: tpu_custom_call.1
$region0: #{tpu_custom_call.1}
  #allocation0 [shape = 'u32[]', space=smem, size = 0x4, offset = 0x4, fixed_abs, tag = 'smem constant byte address 0x4 - core index']
  #allocation1 [shape = 'u32[72,128]{1,0:T(1,128)}', space=vmem, size = 0x9000, scoped, tag = 'internal scratch']
  #allocation2 [shape = 'f32[8,128]{1,0:T(8,128)}', space=vmem, size = 0x1000, scoped, tag = 'scratch operand']
  %s0 = inlined_call_operand.vmem [shape: s32[8,1], index: 0, kind: input, shape index: {}]
  %s1 = inlined_call_operand.hbm [shape: f32[64,128], index: 1, kind: input, shape index: {}]
  %s2 = inlined_call_operand.hbm [shape: f32[8,128], index: 2, kind: output, shape index: {}]
  %s3 = sld [smem:[#allocation0]]
  $region22: #{tpu_custom_call.1} parent=0
    _
  %s5 = ssub.s32 1, %s3
  %s6 = scalar_select 0, %s5, %s3
  $region1: #{tpu_custom_call.1} parent=0
    #allocation3 [shape = 'u8[32768]{0}', space=vmem, size = 0x8000, scoped, tag = 'input window, operand 1, single buffered']
    #allocation4 [shape = 's32[1]{0}', space=sflag, size = 0x4, scoped, tag = 'scoped memory for tpu_custom_call.1']
    #allocation5 [shape = 's32[1]{0}', space=sflag, size = 0x4, scoped, tag = 'scoped memory for tpu_custom_call.1']
    #allocation6 [shape = 'u8[4096]{0}', space=vmem, size = 0x1000, scoped, tag = 'output window, operand 0, single buffered']
    %7 = vsyncpa [#allocation4], 0
    %8 = vsyncpa [#allocation5], 0
    // Predicated region
    $region2: #{tpu_custom_call.1} parent=1 // pred_check
      _
    $region3: #{tpu_custom_call.1} parent=1 // pred_check_branch
      %10 = sbr.rel (0) target = $region5
    $region4: #{tpu_custom_call.1} parent=1 // pred_region
      _
    $region5: #{tpu_custom_call.1} parent=1 // pred_fallthru
      _
    // Predicated region
    $region6: #{tpu_custom_call.1} parent=1 // pred_check
      _
    $region7: #{tpu_custom_call.1} parent=1 // pred_check_branch
      %12 = sbr.rel (0) target = $region9
    $region8: #{tpu_custom_call.1} parent=1 // pred_region
      %14 = vsyncadd [#allocation4], 0
      %s15 = sshll.u32 %s1, 4
      %s16 = int_to_ptr.hbm [resolvable:$true] %s15
      %s17 = sshll.u32 [#allocation3], 4
      %s18 = int_to_ptr.vmem [resolvable:$true] %s17
      %23 = dma.hbm_to_vmem [thread:$0]  %s16, 1024, %s18, [#allocation4], 128, 128, 8
    $region9: #{tpu_custom_call.1} parent=1 // pred_fallthru
      _
    // Predicated region
    $region10: #{tpu_custom_call.1} parent=1 // pred_check
      _
    $region11: #{tpu_custom_call.1} parent=1 // pred_check_branch
      %25 = sbr.rel (0) target = $region13
    $region12: #{tpu_custom_call.1} parent=1 // pred_region
      %27 = dma.done [#allocation4], 1024
    $region13: #{tpu_custom_call.1} parent=1 // pred_fallthru
      _
    %v28 = vld [vmem:[%s0] sm:$0xff]
    %v29 = vlaneseq
    %v30 = vand.u32 %v29, 127
    %31 = vset.pattern.permute.xlu0 0
    %32 = vperm.xlu0 %31, %v28
    %v33 = vpop.permute.xlu0 %32
    %vm34 = vcmp.eq.s32.totalorder %v30, %v33
    %v35 = vsel %vm34, 1, 0
    %v36 = vcvt.s32.f32 %v35
    %v37 = vld [vmem:[#allocation3] sm:$0xff]
    %v38 = vld [vmem:[#allocation3 + $0x8] sm:$0xff]
    %v39 = vld [vmem:[#allocation3 + $0x10] sm:$0xff]
    %v40 = vld [vmem:[#allocation3 + $0x18] sm:$0xff]
    %v41 = vld [vmem:[#allocation3 + $0x20] sm:$0xff]
    %v42 = vld [vmem:[#allocation3 + $0x28] sm:$0xff]
    %v43 = vld [vmem:[#allocation3 + $0x30] sm:$0xff]
    %v44 = vld [vmem:[#allocation3 + $0x38] sm:$0xff]
    %vm45 = vcmask 523264
    %v47 = vsel %vm45, %v36, 0
    %49 = vmatpush.msra.mxu0 0.0
    %50 = vmatpush.msra.mxu0 0.0
    %51 = vmatpush.msra.mxu0 0.0
    %52 = vmatpush.msra.mxu0 0.0
    %53 = vmatpush.msra.mxu0 0.0
    %54 = vmatpush.msra.mxu0 0.0
    %55 = vmatpush.msra.mxu0 0.0
    %56 = vmatpush.msra.mxu0 0.0
    %v57 = vand.u32 %v44, 4294901760
    %58 = vmatpush.msra.mxu0 %v57
    %v59 = vand.u32 %v43, 4294901760
    %60 = vmatpush.msra.mxu0 %v59
    %v61 = vand.u32 %v42, 4294901760
    %62 = vmatpush.msra.mxu0 %v61
    %v63 = vand.u32 %v41, 4294901760
    %64 = vmatpush.msra.mxu0 %v63
    %v65 = vand.u32 %v40, 4294901760
    %66 = vmatpush.msra.mxu0 %v65
    %v67 = vand.u32 %v39, 4294901760
    %68 = vmatpush.msra.mxu0 %v67
    %v69 = vand.u32 %v38, 4294901760
    %70 = vmatpush.msra.mxu0 %v69
    %v71 = vand.u32 %v37, 4294901760
    %72 = vmatpush.msra.mxu0 %v71
    %v73 = vand.u32 %v47, 4294901760
    %v74 = vsub.f32 %v47, %v73
    %v75 = vand.u32 %v74, 4294901760
    %v76 = vsub.f32 %v74, %v75
    %v77 = vand.u32 %v76, 4294901760
    %78 = vmatmul.f32.gmra.mxu0 %v77
    %v79 = vpop.f32.mrf.mxu0
    %v80 = vadd.f32 0.0, %v79
    %81 = vdwg.mxu0
    %82 = vmatpush.msra.mxu0 0.0
    %83 = vmatpush.msra.mxu0 0.0
    %84 = vmatpush.msra.mxu0 0.0
    %85 = vmatpush.msra.mxu0 0.0
    %86 = vmatpush.msra.mxu0 0.0
    %87 = vmatpush.msra.mxu0 0.0
    %88 = vmatpush.msra.mxu0 0.0
    %89 = vmatpush.msra.mxu0 0.0
    %v90 = vand.u32 %v44, 4294901760
    %v91 = vsub.f32 %v44, %v90
    %v92 = vand.u32 %v91, 4294901760
    %v93 = vsub.f32 %v91, %v92
    %v94 = vand.u32 %v93, 4294901760
    %95 = vmatpush.msra.mxu0 %v94
    %v96 = vand.u32 %v43, 4294901760
    %v97 = vsub.f32 %v43, %v96
    %v98 = vand.u32 %v97, 4294901760
    %v99 = vsub.f32 %v97, %v98
    %v100 = vand.u32 %v99, 4294901760
    %101 = vmatpush.msra.mxu0 %v100
    %v102 = vand.u32 %v42, 4294901760
    %v103 = vsub.f32 %v42, %v102
    %v104 = vand.u32 %v103, 4294901760
    %v105 = vsub.f32 %v103, %v104
    %v106 = vand.u32 %v105, 4294901760
    %107 = vmatpush.msra.mxu0 %v106
    %v108 = vand.u32 %v41, 4294901760
    %v109 = vsub.f32 %v41, %v108
    %v110 = vand.u32 %v109, 4294901760
    %v111 = vsub.f32 %v109, %v110
    %v112 = vand.u32 %v111, 4294901760
    %113 = vmatpush.msra.mxu0 %v112
    %v114 = vand.u32 %v40, 4294901760
    %v115 = vsub.f32 %v40, %v114
    %v116 = vand.u32 %v115, 4294901760
    %v117 = vsub.f32 %v115, %v116
    %v118 = vand.u32 %v117, 4294901760
    %119 = vmatpush.msra.mxu0 %v118
    %v120 = vand.u32 %v39, 4294901760
    %v121 = vsub.f32 %v39, %v120
    %v122 = vand.u32 %v121, 4294901760
    %v123 = vsub.f32 %v121, %v122
    %v124 = vand.u32 %v123, 4294901760
    %125 = vmatpush.msra.mxu0 %v124
    %v126 = vand.u32 %v38, 4294901760
    %v127 = vsub.f32 %v38, %v126
    %v128 = vand.u32 %v127, 4294901760
    %v129 = vsub.f32 %v127, %v128
    %v130 = vand.u32 %v129, 4294901760
    %131 = vmatpush.msra.mxu0 %v130
    %v132 = vand.u32 %v37, 4294901760
    %v133 = vsub.f32 %v37, %v132
    %v134 = vand.u32 %v133, 4294901760
    %v135 = vsub.f32 %v133, %v134
    %v136 = vand.u32 %v135, 4294901760
    %137 = vmatpush.msra.mxu0 %v136
    %v138 = vand.u32 %v47, 4294901760
    %139 = vmatmul.f32.gmra.mxu0 %v138
    %v140 = vpop.f32.mrf.mxu0
    %v141 = vadd.f32 %v80, %v140
    %142 = vdwg.mxu0
    %143 = vmatpush.msra.mxu0 0.0
    %144 = vmatpush.msra.mxu0 0.0
    %145 = vmatpush.msra.mxu0 0.0
    %146 = vmatpush.msra.mxu0 0.0
    %147 = vmatpush.msra.mxu0 0.0
    %148 = vmatpush.msra.mxu0 0.0
    %149 = vmatpush.msra.mxu0 0.0
    %150 = vmatpush.msra.mxu0 0.0
    %v151 = vand.u32 %v44, 4294901760
    %v152 = vsub.f32 %v44, %v151
    %153 = vmatpush.msra.mxu0 %v152
    %v154 = vand.u32 %v43, 4294901760
    %v155 = vsub.f32 %v43, %v154
    %156 = vmatpush.msra.mxu0 %v155
    %v157 = vand.u32 %v42, 4294901760
    %v158 = vsub.f32 %v42, %v157
    %159 = vmatpush.msra.mxu0 %v158
    %v160 = vand.u32 %v41, 4294901760
    %v161 = vsub.f32 %v41, %v160
    %162 = vmatpush.msra.mxu0 %v161
    %v163 = vand.u32 %v40, 4294901760
    %v164 = vsub.f32 %v40, %v163
    %165 = vmatpush.msra.mxu0 %v164
    %v166 = vand.u32 %v39, 4294901760
    %v167 = vsub.f32 %v39, %v166
    %168 = vmatpush.msra.mxu0 %v167
    %v169 = vand.u32 %v38, 4294901760
    %v170 = vsub.f32 %v38, %v169
    %171 = vmatpush.msra.mxu0 %v170
    %v172 = vand.u32 %v37, 4294901760
    %v173 = vsub.f32 %v37, %v172
    %174 = vmatpush.msra.mxu0 %v173
    %v175 = vand.u32 %v47, 4294901760
    %v176 = vsub.f32 %v47, %v175
    %177 = vmatmul.f32.gmra.mxu0 %v176
    %v178 = vpop.f32.mrf.mxu0
    %v179 = vadd.f32 %v141, %v178
    %180 = vdwg.mxu0
    %181 = vmatpush.msra.mxu0 0.0
    %182 = vmatpush.msra.mxu0 0.0
    %183 = vmatpush.msra.mxu0 0.0
    %184 = vmatpush.msra.mxu0 0.0
    %185 = vmatpush.msra.mxu0 0.0
    %186 = vmatpush.msra.mxu0 0.0
    %187 = vmatpush.msra.mxu0 0.0
    %188 = vmatpush.msra.mxu0 0.0
    %v189 = vand.u32 %v44, 4294901760
    %190 = vmatpush.msra.mxu0 %v189
    %v191 = vand.u32 %v43, 4294901760
    %192 = vmatpush.msra.mxu0 %v191
    %v193 = vand.u32 %v42, 4294901760
    %194 = vmatpush.msra.mxu0 %v193
    %v195 = vand.u32 %v41, 4294901760
    %196 = vmatpush.msra.mxu0 %v195
    %v197 = vand.u32 %v40, 4294901760
    %198 = vmatpush.msra.mxu0 %v197
    %v199 = vand.u32 %v39, 4294901760
    %200 = vmatpush.msra.mxu0 %v199
    %v201 = vand.u32 %v38, 4294901760
    %202 = vmatpush.msra.mxu0 %v201
    %v203 = vand.u32 %v37, 4294901760
    %204 = vmatpush.msra.mxu0 %v203
    %v205 = vand.u32 %v47, 4294901760
    %v206 = vsub.f32 %v47, %v205
    %v207 = vand.u32 %v206, 4294901760
    %208 = vmatmul.f32.gmra.mxu0 %v207
    %v209 = vpop.f32.mrf.mxu0
    %v210 = vadd.f32 %v179, %v209
    %211 = vdwg.mxu0
    %212 = vmatpush.msra.mxu0 0.0
    %213 = vmatpush.msra.mxu0 0.0
    %214 = vmatpush.msra.mxu0 0.0
    %215 = vmatpush.msra.mxu0 0.0
    %216 = vmatpush.msra.mxu0 0.0
    %217 = vmatpush.msra.mxu0 0.0
    %218 = vmatpush.msra.mxu0 0.0
    %219 = vmatpush.msra.mxu0 0.0
    %v220 = vand.u32 %v44, 4294901760
    %v221 = vsub.f32 %v44, %v220
    %v222 = vand.u32 %v221, 4294901760
    %223 = vmatpush.msra.mxu0 %v222
    %v224 = vand.u32 %v43, 4294901760
    %v225 = vsub.f32 %v43, %v224
    %v226 = vand.u32 %v225, 4294901760
    %227 = vmatpush.msra.mxu0 %v226
    %v228 = vand.u32 %v42, 4294901760
    %v229 = vsub.f32 %v42, %v228
    %v230 = vand.u32 %v229, 4294901760
    %231 = vmatpush.msra.mxu0 %v230
    %v232 = vand.u32 %v41, 4294901760
    %v233 = vsub.f32 %v41, %v232
    %v234 = vand.u32 %v233, 4294901760
    %235 = vmatpush.msra.mxu0 %v234
    %v236 = vand.u32 %v40, 4294901760
    %v237 = vsub.f32 %v40, %v236
    %v238 = vand.u32 %v237, 4294901760
    %239 = vmatpush.msra.mxu0 %v238
    %v240 = vand.u32 %v39, 4294901760
    %v241 = vsub.f32 %v39, %v240
    %v242 = vand.u32 %v241, 4294901760
    %243 = vmatpush.msra.mxu0 %v242
    %v244 = vand.u32 %v38, 4294901760
    %v245 = vsub.f32 %v38, %v244
    %v246 = vand.u32 %v245, 4294901760
    %247 = vmatpush.msra.mxu0 %v246
    %v248 = vand.u32 %v37, 4294901760
    %v249 = vsub.f32 %v37, %v248
    %v250 = vand.u32 %v249, 4294901760
    %251 = vmatpush.msra.mxu0 %v250
    %v252 = vand.u32 %v47, 4294901760
    %253 = vmatmul.f32.gmra.mxu0 %v252
    %v254 = vpop.f32.mrf.mxu0
    %v255 = vadd.f32 %v210, %v254
    %256 = vdwg.mxu0
    %257 = vmatpush.msra.mxu0 0.0
    %258 = vmatpush.msra.mxu0 0.0
    %259 = vmatpush.msra.mxu0 0.0
    %260 = vmatpush.msra.mxu0 0.0
    %261 = vmatpush.msra.mxu0 0.0
    %262 = vmatpush.msra.mxu0 0.0
    %263 = vmatpush.msra.mxu0 0.0
    %264 = vmatpush.msra.mxu0 0.0
    %v265 = vand.u32 %v44, 4294901760
    %266 = vmatpush.msra.mxu0 %v265
    %v267 = vand.u32 %v43, 4294901760
    %268 = vmatpush.msra.mxu0 %v267
    %v269 = vand.u32 %v42, 4294901760
    %270 = vmatpush.msra.mxu0 %v269
    %v271 = vand.u32 %v41, 4294901760
    %272 = vmatpush.msra.mxu0 %v271
    %v273 = vand.u32 %v40, 4294901760
    %274 = vmatpush.msra.mxu0 %v273
    %v275 = vand.u32 %v39, 4294901760
    %276 = vmatpush.msra.mxu0 %v275
    %v277 = vand.u32 %v38, 4294901760
    %278 = vmatpush.msra.mxu0 %v277
    %v279 = vand.u32 %v37, 4294901760
    %280 = vmatpush.msra.mxu0 %v279
    %v281 = vand.u32 %v47, 4294901760
    %282 = vmatmul.f32.gmra.mxu0 %v281
    %v283 = vpop.f32.mrf.mxu0
    %v284 = vadd.f32 %v255, %v283
    %285 = vdwg.mxu0
    %286 = vst [vmem:[#allocation6] sm:$0xff] %v284
    // Predicated region
    $region14: #{tpu_custom_call.1} parent=1 // pred_check
      _
    $region15: #{tpu_custom_call.1} parent=1 // pred_check_branch
      %288 = sbr.rel (0) target = $region17
    $region16: #{tpu_custom_call.1} parent=1 // pred_region
      %290 = vsyncadd [#allocation5], 0
      %s292 = sshll.u32 [#allocation6], 4
      %s293 = int_to_ptr.vmem [resolvable:$true] %s292
      %s294 = sshll.u32 %s2, 4
      %s295 = int_to_ptr.hbm [resolvable:$true] %s294
      %297 = dma.vmem_to_hbm [thread:$0]  %s293, 128, %s295, [#allocation5]
    $region17: #{tpu_custom_call.1} parent=1 // pred_fallthru
      _
    // Predicated region
    $region18: #{tpu_custom_call.1} parent=1 // pred_check
      _
    $region19: #{tpu_custom_call.1} parent=1 // pred_check_branch
      %299 = sbr.rel (0) target = $region21
    $region20: #{tpu_custom_call.1} parent=1 // pred_region
      %301 = dma.done [#allocation5], 128
    $region21: #{tpu_custom_call.1} parent=1 // pred_fallthru
      _
    %302 = vsyncpa [#allocation4], 1
    %303 = vsyncpa [#allocation5], 1

</llo_original>
